<compile_context>
chip_gen: v7x
topology: tpu7x:2x2x1
jax: 0.10.0
libtpu: 0.0.40
codegen_flags: <defaults>
</compile_context>

<pallas_src>
import itertools

import jax
import jax.numpy as jnp
from jax import lax
from jax.experimental import pallas as pl
from jax.experimental.pallas import tpu as pltpu

_MiB = 1024 * 1024


def _fuse_kernel(sent2img_ref, img_ref, txt_ref, out_ref):
    # img_ref: (1, C, TS)  lane-dense spatial tile of this sentence's image features
    # txt_ref: (T, N)      whole text matrix, resident in VMEM (T on sublanes,
    #                      sentences on lanes); DMA'd once (constant index map)
    # out_ref: (1, C+T, TS)
    del sent2img_ref  # only used by the index_maps
    c = img_ref.shape[1]
    t, n = txt_ref.shape
    ts = out_ref.shape[2]
    s = pl.program_id(1)

    # image channels: straight copy of the lane-dense tile (pack to out dtype on store)
    out_ref[:, :c, :] = img_ref[...].astype(out_ref.dtype)

    # text channels: select column s of the resident (T, N) text matrix via a lane
    # one-hot + cross-lane reduce (cheap XLU work, no lane-width-1 DMAs and no
    # relayout through VMEM), then broadcast along the lane (spatial) axis — this
    # is the repeat(1, 1, H, W) of the PyTorch code.
    lane_ids = lax.broadcasted_iota(jnp.int32, (t, n), dimension=1)
    col = jnp.sum(jnp.where(lane_ids == s, txt_ref[...], 0.0).astype(jnp.float32),
                  axis=1, keepdims=True)                      # (T, 1), exact (one term)
    col = col.astype(out_ref.dtype)
    out_ref[:, c:, :] = jnp.broadcast_to(col[None], (1, t, ts))


def _vmem_capacity_bytes():
    """Physical VMEM per core (generation-aware tile / limit choices)."""
    try:
        cap = getattr(pltpu.get_tpu_info(), "vmem_capacity_bytes", None)
        if cap:
            return int(cap)
    except Exception:
        pass
    try:
        kind = jax.devices()[0].device_kind.lower()
    except Exception:
        kind = ""
    # v7x-class parts: 64 MiB per TensorCore; v5e / v6e: 128 MiB.
    return 64 * _MiB if "v7" in kind else 128 * _MiB


def _padded_block_bytes(shape, dtype):
    """VMEM bytes of one block buffer after (sublane, lane) padding."""
    itemsize = jnp.dtype(dtype).itemsize
    sub = 8 * max(1, 4 // itemsize)       # packed sublane granule (8 f32 / 16 bf16)
    dims = list(shape)
    dims[-1] = -(-dims[-1] // 128) * 128
    if len(dims) >= 2:
        dims[-2] = -(-dims[-2] // sub) * sub
    nbytes = itemsize
    for d in dims:
        nbytes *= d
    return nbytes


def _pick_spatial_tile(s_total, out_chan, out_itemsize, vmem_cap):
    """Largest lane-dense spatial tile whose output block fits a per-generation
    byte budget (the pipeline double-buffers it)."""
    # ~10 MiB output blocks on 64 MiB-VMEM parts (v7x), ~12 MiB on 128 MiB parts.
    target = (10 if vmem_cap <= 64 * _MiB else 12) * _MiB
    if s_total <= 256 or out_chan * s_total * out_itemsize <= target:
        return int(s_total)               # whole spatial extent fits in one block
    ts = (target // (out_chan * out_itemsize)) // 128 * 128
    return int(max(128, min(ts, (s_total // 128) * 128)))


def fuse_level(feature, text_features, sent2img, *,
               out_dtype=jnp.bfloat16, spatial_tile=None):
    """One FPN level of the ReferExpRCNN_Old fusion.

    feature:       (B_img, C, H, W)  NCHW backbone output
    text_features: (N_sent, T)       LSTM hidden state, squeezed
    sent2img:      (N_sent,) int32   sentence -> image index; MUST be
                                     non-decreasing (sentences grouped by image)
                                     so consecutive grid steps reuse the image DMA.
    out_dtype:     bf16 by default (kernel is HBM-writeback bound; note the f32
                   text half is intentionally downcast).  For bf16 keep C a
                   multiple of 16 so the channel-split store stays packed-aligned.
    returns:       (N_sent, C + T, H, W)
    """
    B, C, H, W = feature.shape
    N, T = text_features.shape
    S = H * W
    out_dtype = jnp.dtype(out_dtype) if out_dtype is not None else feature.dtype

    # Lane-dense views: spatial flattened onto lanes (contiguous reshape, free);
    # text transposed so T sits on sublanes matching the output channel axis
    # (tiny N*T transpose, negligible vs. the output writeback).
    feat_flat = feature.reshape(B, C, S)
    txt_t = text_features.T                      # (T, N)

    vmem_cap = _vmem_capacity_bytes()
    ts = int(spatial_tile) if spatial_tile is not None else _pick_spatial_tile(
        S, C + T, jnp.dtype(out_dtype).itemsize, vmem_cap)
    n_s_tiles = pl.cdiv(S, ts)

    # VMEM limit from the actual double-buffered block footprint + headroom for
    # Mosaic internal scratch (instead of a flat cap).
    footprint = 2 * (_padded_block_bytes((1, C + T, ts), out_dtype)
                     + _padded_block_bytes((1, C, ts), feature.dtype)
                     + _padded_block_bytes((T, N), txt_t.dtype))
    vmem_limit = int(min(vmem_cap - 4 * _MiB,
                         max(32 * _MiB, footprint + 16 * _MiB)))

    grid_spec = pltpu.PrefetchScalarGridSpec(
        num_scalar_prefetch=1,
        # spatial tile OUTER, sentence INNER: with non-decreasing sent2img the
        # image block index repeats across consecutive sentences of one image
        # and the pipeline skips the re-DMA of the (C, ts) image tile.
        grid=(n_s_tiles, N),
        in_specs=[
            # image-feature spatial tile of this sentence's image
            pl.BlockSpec((1, C, ts), lambda k, s, s2i: (s2i[s], 0, k)),
            # whole text matrix, constant block index -> one DMA, stays resident
            pl.BlockSpec((T, N), lambda k, s, s2i: (0, 0)),
        ],
        out_specs=pl.BlockSpec((1, C + T, ts), lambda k, s, s2i: (s, 0, k)),
    )

    out_flat = pl.pallas_call(
        _fuse_kernel,
        out_shape=jax.ShapeDtypeStruct((N, C + T, S), out_dtype),
        grid_spec=grid_spec,
        compiler_params=pltpu.CompilerParams(
            # every (spatial-tile, sentence) block is written exactly once and
            # there is no accumulator, so both axes are parallel-safe; this keeps
            # v7x megacore busy even when the spatial extent is a single tile.
            dimension_semantics=("parallel", "parallel"),
            vmem_limit_bytes=vmem_limit,
        ),
    )(sent2img, feat_flat, txt_t)

    return out_flat.reshape(N, C + T, H, W)      # contiguous reshape, free


def fuse_level_ref(feature, text_features, sent2img):
    """Pure-JAX reference reproducing the PyTorch loop semantics (f32)."""
    N, T = text_features.shape
    H, W = feature.shape[2], feature.shape[3]
    img = feature[sent2img]
    txt = jnp.broadcast_to(text_features.reshape(N, T, 1, 1), (N, T, H, W))
    return jnp.concatenate([img, txt], axis=1)


def refexp_rcnn_old_forward(image_features, text_features, sentences_per_image,
                            image_sizes_in, *, out_dtype=jnp.bfloat16):
    """Inference-path fusion of ReferExpRCNN_Old.forward (per-level loop)."""
    # sentence -> image mapping (the image_mask / cumulative-sum logic);
    # contiguous per image, i.e. non-decreasing -> enables image-DMA reuse.
    sent2img_list = [j for j, rep in enumerate(sentences_per_image) for _ in range(rep)]
    assert all(a <= b for a, b in zip(sent2img_list, sent2img_list[1:])), \
        "sent2img must be non-decreasing (sentences grouped by image)"
    sent2img = jnp.asarray(sent2img_list, dtype=jnp.int32)
    # image_sizes bookkeeping (itertools.repeat in the original code)
    image_sizes = []
    for j, rep in enumerate(sentences_per_image):
        image_sizes.extend(list(itertools.repeat(image_sizes_in[j], rep)))
    full_feature = [fuse_level(f, text_features, sent2img, out_dtype=out_dtype)
                    for f in image_features]
    # TODO(synk): ref_rpn / ref_roi_heads consume (image_sizes, full_feature);
    # they are full sub-networks with no single clean Pallas equivalent.
    # TODO(synk): biggest remaining lever is algorithmic — ~T/(C+T) of this output
    # is a spatially-constant text broadcast that ref_rpn's first conv could consume
    # as a per-sentence bias (W_text @ text added to conv(image_channels)), dropping
    # ~80% of this HBM writeback and its re-read entirely.
    return full_feature, image_sizes, sent2img


if __name__ == "__main__":
    key = jax.random.PRNGKey(0)
    k_img0, k_img1, k_img2, k_txt = jax.random.split(key, 4)

    # small, forward-consistent shapes (stand-ins: C=16 for 256, T=32 for 1024;
    # C kept a multiple of 16 so the bf16 channel split stays sublane-aligned)
    B_img = 2
    C = 16
    T = 32
    sentences_per_image = [3, 2]        # N_sent = 5
    N_sent = sum(sentences_per_image)
    image_sizes_in = [(16, 16), (16, 16)]

    # two FPN-style feature levels, NCHW (lane-dense after flatten: S=256, 128)
    image_features = [
        jax.random.normal(k_img0, (B_img, C, 16, 16), dtype=jnp.float32),
        jax.random.normal(k_img1, (B_img, C, 8, 16), dtype=jnp.float32),
    ]
    # LSTM hidden state h_0 squeezed to (N_sent, T)
    text_features = jax.random.normal(k_txt, (N_sent, T), dtype=jnp.float32)

    full_feature, image_sizes, sent2img = refexp_rcnn_old_forward(
        image_features, text_features, sentences_per_image, image_sizes_in)
    full_feature = [jax.block_until_ready(f) for f in full_feature]

    # verify against the pure-JAX reference of the PyTorch semantics (bf16 output)
    for f, img in zip(full_feature, image_features):
        ref = fuse_level_ref(img, text_features, sent2img).astype(jnp.bfloat16)
        assert f.shape == ref.shape and f.dtype == ref.dtype
        assert jnp.allclose(f.astype(jnp.float32), ref.astype(jnp.float32),
                            atol=1e-2, rtol=1e-2), "mismatch vs reference"
    assert len(image_sizes) == N_sent

    # extra check: spatial extent not a multiple of 128 with a forced partial last
    # spatial tile (exercises Pallas edge masking on image read and output store)
    feat_ragged = jax.random.normal(k_img2, (B_img, C, 9, 16), dtype=jnp.float32)  # S=144
    out_r = jax.block_until_ready(
        fuse_level(feat_ragged, text_features, sent2img, spatial_tile=128))
    ref_r = fuse_level_ref(feat_ragged, text_features, sent2img).astype(jnp.bfloat16)
    assert out_r.shape == ref_r.shape and out_r.dtype == ref_r.dtype
    assert jnp.allclose(out_r.astype(jnp.float32), ref_r.astype(jnp.float32),
                        atol=1e-2, rtol=1e-2), "mismatch vs reference (ragged tile)"

    print("KERNEL_OK")
</pallas_src>

<mosaic_0001>
module attributes {stable_mosaic.version = 11 : i64} {
  func.func @_fuse_kernel(%arg0: i32, %arg1: i32, %arg2: memref<5xi32, #tpu.memory_space<smem>>, %arg3: memref<1x16x256xf32, #tpu.memory_space<vmem>>, %arg4: memref<32x5xf32, #tpu.memory_space<vmem>>, %arg5: memref<1x48x256xbf16, #tpu.memory_space<vmem>>) attributes {dimension_semantics = [#tpu.dimension_semantics<parallel>, #tpu.dimension_semantics<parallel>], iteration_bounds = array<i64: 1, 5>, scalar_prefetch = 1 : i64, scratch_operands = 0 : i64, tpu.core_type = #tpu.core_type<tc>, window_params = [{transform_indices = @transform_0, window_bounds = array<i64: 1, 16, 256>}, {pipeline_mode = #tpu.pipeline_mode<synchronous>, transform_indices = @transform_1, window_bounds = array<i64: 32, 5>}, {transform_indices = @transform_2, window_bounds = array<i64: 1, 48, 256>}]} {
    %c0 = arith.constant 0 : index
    %c0_0 = arith.constant 0 : index
    %c0_1 = arith.constant 0 : index
    %0 = vector.load %arg3[%c0, %c0_0, %c0_1] : memref<1x16x256xf32, #tpu.memory_space<vmem>>, vector<1x16x256xf32>
    %1 = arith.truncf %0 : vector<1x16x256xf32> to vector<1x16x256xbf16>
    %c0_2 = arith.constant 0 : index
    %c0_3 = arith.constant 0 : index
    %c0_4 = arith.constant 0 : index
    %2 = vector.load %arg5[%c0_2, %c0_3, %c0_4] : memref<1x48x256xbf16, #tpu.memory_space<vmem>>, vector<1x16x256xbf16>
    tpu.vector_store %arg5[%c0_2, %c0_3, %c0_4], %1 {strides = array<i32>} : memref<1x48x256xbf16, #tpu.memory_space<vmem>>, vector<1x16x256xbf16>,
    %3 = tpu.iota {dimensions = array<i32: 1>} : vector<32x5xi32>
    %4 = vector.broadcast %arg1 : i32 to vector<32x5xi32>
    %5 = arith.cmpi eq, %3, %4 : vector<32x5xi32>
    %c0_5 = arith.constant 0 : index
    %c0_6 = arith.constant 0 : index
    %6 = vector.load %arg4[%c0_5, %c0_6] : memref<32x5xf32, #tpu.memory_space<vmem>>, vector<32x5xf32>
    %cst = arith.constant 0.000000e+00 : f32
    %7 = vector.broadcast %cst : f32 to vector<32x5xf32>
    %8 = arith.select %5, %6, %7 : vector<32x5xi1>, vector<32x5xf32>
    %cst_7 = arith.constant dense<0.000000e+00> : vector<32xf32>
    %9 = vector.multi_reduction <add>, %8, %cst_7 [1] : vector<32x5xf32> to vector<32xf32>
    %10 = vector.shape_cast %9 : vector<32xf32> to vector<32x1xf32>
    %11 = arith.truncf %10 : vector<32x1xf32> to vector<32x1xbf16>
    %12 = vector.shape_cast %11 : vector<32x1xbf16> to vector<1x32x1xbf16>
    %13 = vector.shape_cast %12 : vector<1x32x1xbf16> to vector<1x32x1xbf16>
    %14 = vector.broadcast %13 : vector<1x32x1xbf16> to vector<1x32x256xbf16>
    %c0_8 = arith.constant 0 : index
    %c16 = arith.constant 16 : index
    %c0_9 = arith.constant 0 : index
    %15 = vector.load %arg5[%c0_8, %c16, %c0_9] : memref<1x48x256xbf16, #tpu.memory_space<vmem>>, vector<1x32x256xbf16>
    tpu.vector_store %arg5[%c0_8, %c16, %c0_9], %14 {strides = array<i32>} : memref<1x48x256xbf16, #tpu.memory_space<vmem>>, vector<1x32x256xbf16>,
    return
  }
  func.func @transform_0(%arg0: i32, %arg1: i32, %arg2: memref<5xi32, #tpu.memory_space<smem>>) -> (i32, i32, i32) {
    %0 = arith.index_cast %arg1 : i32 to index
    %1 = memref.load %arg2[%0] : memref<5xi32, #tpu.memory_space<smem>>
    %c0_i32 = arith.constant 0 : i32
    %c0_i32_0 = arith.constant 0 : i32
    return %1, %c0_i32, %arg0 : i32, i32, i32
  }
  func.func @transform_1(%arg0: i32, %arg1: i32, %arg2: memref<5xi32, #tpu.memory_space<smem>>) -> (i32, i32) {
    %c0_i32 = arith.constant 0 : i32
    %c0_i32_0 = arith.constant 0 : i32
    %c0_i32_1 = arith.constant 0 : i32
    return %c0_i32, %c0_i32_0 : i32, i32
  }
  func.func @transform_2(%arg0: i32, %arg1: i32, %arg2: memref<5xi32, #tpu.memory_space<smem>>) -> (i32, i32, i32) {
    %c0_i32 = arith.constant 0 : i32
    %c0_i32_0 = arith.constant 0 : i32
    return %arg1, %c0_i32, %arg0 : i32, i32, i32
  }
}

</mosaic_0001>

<llo_original>
// kernel: tpu_custom_call.1
$region0: #{tpu_custom_call.1}
  #allocation0 [shape = 'u32[]', space=smem, size = 0x4, offset = 0x4, fixed_abs, tag = 'smem constant byte address 0x4 - core index']
  #allocation1 [shape = 'u32[144,128]{1,0:T(1,128)}', space=vmem, size = 0x12000, scoped, tag = 'internal scratch']
  #allocation2 [shape = 's32[1]{0}', space=sflag, size = 0x4, scoped, tag = 'scoped memory for tpu_custom_call.1']
  #allocation3 [shape = 'u8[512]{0}', space=smem, size = 0x200, scoped, tag = 'prefetched SMEM operand 0']
  %s0 = inlined_call_operand.vmem [shape: s32[5], index: 0, kind: input, shape index: {}]
  %s1 = inlined_call_operand.hbm [shape: f32[2,16,256], index: 1, kind: input, shape index: {}]
  %s2 = inlined_call_operand.vmem [shape: f32[32,5], index: 2, kind: input, shape index: {}]
  %s3 = inlined_call_operand.hbm [shape: bf16[5,48,256], index: 3, kind: output, shape index: {}]
  %s4 = sld [smem:[#allocation0]]
  $region45: #{tpu_custom_call.1} parent=0
    _
  %s6 = ssub.s32 1, %s4
  %s7 = scalar_select 0, %s6, %s4
  %s8 = sshll.u32 %s0, 4
  %s9 = int_to_ptr.vmem [resolvable:$true] %s8
  %11 = dma.vmem_to_smem %s9, 16, [#allocation3], [#allocation2]
  %12 = dma.done [#allocation2], 16
  %13 = sfence
  $region1: #{tpu_custom_call.1} parent=0
    #allocation4 [shape = 'u8[32768]{0}', space=vmem, size = 0x8000, scoped, tag = 'input window, operand 1']
    #allocation5 [shape = 's32[2]{0}', space=sflag, size = 0x8, scoped, tag = 'scoped memory for tpu_custom_call.1']
    #allocation6 [shape = 's32[2]{0}', space=sflag, size = 0x8, scoped, tag = 'scoped memory for tpu_custom_call.1']
    #allocation7 [shape = 'u8[49152]{0}', space=vmem, size = 0xc000, scoped, tag = 'output window, operand 0']
    %14 = vsyncpa [#allocation5], 0
    %s15 = scalar_lea.sflag [#allocation5], 1
    %16 = vsyncpa %s15, 0
    %17 = vsyncpa [#allocation6], 0
    %s18 = scalar_lea.sflag [#allocation6], 1
    %19 = vsyncpa %s18, 0
    loop: start=0, step=1, limit=7
    $region2: #{tpu_custom_call.1} parent=1 // loop_pre_header
      _
    $region3: #{tpu_custom_call.1} parent=1 // loop_header
      %s21 = sphi 0, %s25
      %p22 = scmp.ge.s32.totalorder %s21, 7
      %s28 = sphi 0, %s40
      %s29 = sphi 0, %s36
      %s30 = sphi 0, %s28
      %s31 = sphi 0, %s29
      %s32 = sphi 0, %s30
      %s33 = sphi 0, %s31
      %s47 = sphi 0, %s49
      %s50 = sphi 0, %s47
      %s51 = sphi 0, %s50
      %s67 = sphi 0, %s51
      %s71 = sphi 0, %s71
      %s73 = sphi 0, %s71
      %s74 = sphi 0, %s73
      %s88 = sphi 0, %s74
      %s96 = sphi 0, %s98
      %s99 = sphi 0, %s96
      %s100 = sphi 0, %s99
      %s116 = sphi 0, %s100
    $region4: #{tpu_custom_call.1} parent=1 // loop_header_branch
      %24 = sbr.rel (%p22) target = $region8
    $region5: #{tpu_custom_call.1} parent=1 // loop_body
      %s26 = ssub.s32 %s21, 1
      %s27 = ssub.s32 %s21, 2
      %s34 = sadd.s32 1, %s29
      %p35 = scmp.ge.s32.totalorder %s34, 5
      %s36 = scalar_select %p35, 0, %s34
      %s37 = sadd.s32 1, %s28
      %s38 = scalar_select %p35, %s37, %s28
      %p39 = scmp.ge.s32.totalorder %s38, 1
      %s40 = scalar_select %p39, 0, %s38
      %s41 = sld [smem:[#allocation3 + %s29]]
      %s42 = sld [smem:[#allocation3 + %s36]]
      %s43 = ssub.s32 %s41, %s42
      %s44 = ssub.s32 %s28, %s40
      %s45 = sor.u32 %s43, %s44
      %p46 = scmp.eq.s32.totalorder %s45, 0
      %s48 = sadd.s32 %s47, 1
      %s49 = scalar_select %p46, %s47, %s48
      %p52 = pneg %p46
      %p53 = scmp.eq.s32.totalorder %s21, 4
      %p54 = por %p52, %p53
      %p55 = scmp.ne.s32.totalorder %s47, %s50
      %p56 = scmp.eq.s32.totalorder %s21, 0
      %p57 = por %p55, %p56
      %p58 = scmp.ne.s32.totalorder %s47, %s50
      %p59 = scmp.eq.s32.totalorder %s26, 4
      %p60 = por %p58, %p59
      %p61 = scmp.ne.s32.totalorder %s50, %s51
      %p62 = scmp.eq.s32.totalorder %s26, 0
      %p63 = por %p61, %p62
      %p64 = scmp.ne.s32.totalorder %s50, %s51
      %p65 = scmp.eq.s32.totalorder %s27, 4
      %p66 = por %p64, %p65
      %p68 = scmp.ne.s32.totalorder %s51, %s67
      %p69 = scmp.eq.s32.totalorder %s27, 0
      %p70 = por %p68, %p69
      %s72 = sadd.s32 %s71, 1
      %p75 = scmp.eq.s32.totalorder %s21, 4
      %p76 = scmp.ne.s32.totalorder %s71, %s73
      %p77 = scmp.eq.s32.totalorder %s21, 0
      %p78 = por %p76, %p77
      %p79 = scmp.ne.s32.totalorder %s71, %s73
      %p80 = scmp.eq.s32.totalorder %s26, 4
      %p81 = por %p79, %p80
      %p82 = scmp.ne.s32.totalorder %s73, %s74
      %p83 = scmp.eq.s32.totalorder %s26, 0
      %p84 = por %p82, %p83
      %p85 = scmp.ne.s32.totalorder %s73, %s74
      %p86 = scmp.eq.s32.totalorder %s27, 4
      %p87 = por %p85, %p86
      %p89 = scmp.ne.s32.totalorder %s74, %s88
      %p90 = scmp.eq.s32.totalorder %s27, 0
      %p91 = por %p89, %p90
      %s92 = ssub.s32 %s29, %s36
      %s93 = ssub.s32 %s28, %s40
      %s94 = sor.u32 %s92, %s93
      %p95 = scmp.eq.s32.totalorder %s94, 0
      %s97 = sadd.s32 %s96, 1
      %s98 = scalar_select %p95, %s96, %s97
      %p101 = pneg %p95
      %p102 = scmp.eq.s32.totalorder %s21, 4
      %p103 = por %p101, %p102
      %p104 = scmp.ne.s32.totalorder %s96, %s99
      %p105 = scmp.eq.s32.totalorder %s21, 0
      %p106 = por %p104, %p105
      %p107 = scmp.ne.s32.totalorder %s96, %s99
      %p108 = scmp.eq.s32.totalorder %s26, 4
      %p109 = por %p107, %p108
      %p110 = scmp.ne.s32.totalorder %s99, %s100
      %p111 = scmp.eq.s32.totalorder %s26, 0
      %p112 = por %p110, %p111
      %p113 = scmp.ne.s32.totalorder %s99, %s100
      %p114 = scmp.eq.s32.totalorder %s27, 4
      %p115 = por %p113, %p114
      %p117 = scmp.ne.s32.totalorder %s100, %s116
      %p118 = scmp.eq.s32.totalorder %s27, 0
      %p119 = por %p117, %p118
      %p120 = scmp.le.s32.totalorder 1, %s21
      %p121 = scmp.lt.s32.totalorder %s21, 6
      %p122 = pnand %p120, %p121
      %p123 = pneg %p122
      // Predicated region
      $region9: #{tpu_custom_call.1} parent=5 // pred_check
        _
      $region10: #{tpu_custom_call.1} parent=5 // pred_check_branch
        %125 = sbr.rel (%p122) target = $region12
      $region11: #{tpu_custom_call.1} parent=5 // pred_region
        %s126 = ssub.s32 %s21, 1
        // Predicated region
        $region13: #{tpu_custom_call.1} parent=11 // pred_check
          %p127 = pneg %p84
        $region14: #{tpu_custom_call.1} parent=11 // pred_check_branch
          %129 = sbr.rel (%p127) target = $region16
        $region15: #{tpu_custom_call.1} parent=11 // pred_region
          _
        $region16: #{tpu_custom_call.1} parent=11 // pred_fallthru
          _
      $region12: #{tpu_custom_call.1} parent=5 // pred_fallthru
        _
      %p130 = scmp.lt.s32.totalorder %s21, 5
      // Predicated region
      $region17: #{tpu_custom_call.1} parent=5 // pred_check
        %p131 = pneg %p130
      $region18: #{tpu_custom_call.1} parent=5 // pred_check_branch
        %133 = sbr.rel (%p131) target = $region20
      $region19: #{tpu_custom_call.1} parent=5 // pred_region
        // Predicated region
        $region21: #{tpu_custom_call.1} parent=19 // pred_check
          %p134 = pneg %p57
        $region22: #{tpu_custom_call.1} parent=19 // pred_check_branch
          %136 = sbr.rel (%p134) target = $region24
        $region23: #{tpu_custom_call.1} parent=19 // pred_region
          %s137 = sand.u32 %s47, 1
          %s138 = scalar_lea.sflag [#allocation5], %s137
          %s139 = sand.u32 %s47, 1
          %s140 = smul.addr %s139, 32
          %s141 = scalar_lea.vmem [#allocation4], %s140
          %s142 = sld [smem:[#allocation3 + %s29]]
          %s143 = smul.u32 2, %s28
          %s145 = ssub.s32 512, 512
          %146 = vsyncadd %s138, %s145
          %s147 = smul.addr %s142, 4
          %s148 = sadd.s32 %s143, %s147
          %s149 = smul.addr %s148, 128
          %s150 = scalar_lea.hbm %s1, %s149
          %s151 = sshll.u32 %s141, 4
          %s152 = int_to_ptr.vmem [resolvable:$true] %s151
          %157 = dma.hbm_to_vmem [thread:$0]  %s150, 512, %s152, %s138, 256, 256, 16
        $region24: #{tpu_custom_call.1} parent=19 // pred_fallthru
          _
      $region20: #{tpu_custom_call.1} parent=5 // pred_fallthru
        _
      %p158 = scmp.le.s32.totalorder 1, %s21
      %p159 = scmp.lt.s32.totalorder %s21, 6
      %p160 = pnand %p158, %p159
      %p161 = pneg %p160
      // Predicated region
      $region25: #{tpu_custom_call.1} parent=5 // pred_check
        _
      $region26: #{tpu_custom_call.1} parent=5 // pred_check_branch
        %163 = sbr.rel (%p160) target = $region28
      $region27: #{tpu_custom_call.1} parent=5 // pred_region
        %s164 = ssub.s32 %s21, 1
        %s165 = sand.u32 %s50, 1
        %s166 = scalar_lea.sflag [#allocation5], %s165
        %s167 = sand.u32 %s50, 1
        %s168 = smul.addr %s167, 32
        %s169 = scalar_lea.vmem [#allocation4], %s168
        // Predicated region
        $region29: #{tpu_custom_call.1} parent=27 // pred_check
          %p170 = pneg %p63
        $region30: #{tpu_custom_call.1} parent=27 // pred_check_branch
          %172 = sbr.rel (%p170) target = $region32
        $region31: #{tpu_custom_call.1} parent=27 // pred_region
          %173 = dma.done %s166, 512
        $region32: #{tpu_custom_call.1} parent=27 // pred_fallthru
          _
        %s174 = sand.u32 %s50, 1
        %s175 = scalar_lea.sflag [#allocation5], %s174
        %s176 = sand.u32 %s50, 1
        %s177 = smul.addr %s176, 32
        %s178 = scalar_lea.vmem [#allocation4], %s177
        %p179 = pneg %p63
        %p180 = pneg %p60
        %p181 = pneg %p84
        %p182 = pneg %p81
        %p183 = pneg %p112
        %p184 = pneg %p109
        %s185 = sand.u32 %s99, 1
        %s186 = scalar_lea.sflag [#allocation6], %s185
        %s187 = sand.u32 %s99, 1
        %s188 = smul.addr %s187, 48
        %s189 = scalar_lea.vmem [#allocation7], %s188
        %s190 = sld [smem:[#allocation3 + %s31]]
        %s191 = smul.u32 2, %s30
        %s192 = smul.u32 2, %s30
        %v193 = vld [vmem:[%s169] sm:$0xff]
        %v194 = vld [vmem:[%s169 + $0x8] sm:$0xff]
        %v195 = vld [vmem:[%s169 + $0x10] sm:$0xff]
        %v196 = vld [vmem:[%s169 + $0x18] sm:$0xff]
        %v197 = vpack.c.bf16 %v195, %v193
        %v198 = vpack.c.bf16 %v196, %v194
        %v201 = vunpack.c.l.b16 %v197
        %v202 = vunpack.c.l.b16 %v198
        %v203 = vunpack.c.h.b16 %v197
        %v204 = vunpack.c.h.b16 %v198
        %v205 = vpack.c.b16 %v202, %v201
        %v206 = vpack.c.b16 %v204, %v203
        %209 = vst [vmem:[%s189] sm:$0xff] %v205
        %210 = vst [vmem:[%s189 + $0x8] sm:$0xff] %v206
        %v211 = vlaneseq
        %v212 = vand.u32 %v211, 127
        %v213 = vstv %s31
        %vm214 = vcmp.eq.s32.totalorder %v212, %v213
        %v215 = vld [vmem:[%s2] sm:$0xff]
        %v216 = vld [vmem:[%s2 + $0x8] sm:$0xff]
        %v217 = vld [vmem:[%s2 + $0x10] sm:$0xff]
        %v218 = vld [vmem:[%s2 + $0x18] sm:$0xff]
        %v219 = vsel %vm214, %v215, 0.0
        %v220 = vsel %vm214, %v216, 0.0
        %v221 = vsel %vm214, %v217, 0.0
        %v222 = vsel %vm214, %v218, 0.0
        %vm223 = vcmask 39936
        %v224 = vsel %vm223, %v219, 0.0
        %225 = vadd.xlane.f32.xlu0 %v224
        %v226 = vpop.xlane.xlu0 %225
        %v227 = vsel %vm223, %v220, 0.0
        %228 = vadd.xlane.f32.xlu0 %v227
        %v229 = vpop.xlane.xlu0 %228
        %v230 = vsel %vm223, %v221, 0.0
        %231 = vadd.xlane.f32.xlu0 %v230
        %v232 = vpop.xlane.xlu0 %231
        %v233 = vsel %vm223, %v222, 0.0
        %234 = vadd.xlane.f32.xlu0 %v233
        %v235 = vpop.xlane.xlu0 %234
        %v236 = vpack.c.bf16 %v229, %v226
        %v237 = vpack.c.bf16 %v235, %v232
        %v241 = vunpack.c.l.s4 839922192
        %v242 = vunpack.c.0.s8 %v241
        %v243 = vlaneseq
        %v244 = vshrl.u32 %v243, 7
        %v245 = vsub.s32 %v242, %v244
        %v246 = vrot.slane %v236, %v245
        %v248 = vunpack.c.l.s4 1985246804
        %v249 = vunpack.c.0.s8 %v248
        %v250 = vlaneseq
        %v251 = vshrl.u32 %v250, 7
        %v252 = vsub.s32 %v249, %v251
        %v253 = vrot.slane %v236, %v252
        %v255 = vunpack.c.l.s4 839922192
        %v256 = vunpack.c.0.s8 %v255
        %v257 = vlaneseq
        %v258 = vshrl.u32 %v257, 7
        %v259 = vsub.s32 %v256, %v258
        %v260 = vrot.slane %v237, %v259
        %v262 = vunpack.c.l.s4 1985246804
        %v263 = vunpack.c.0.s8 %v262
        %v264 = vlaneseq
        %v265 = vshrl.u32 %v264, 7
        %v266 = vsub.s32 %v263, %v265
        %v267 = vrot.slane %v237, %v266
        %272 = vst [vmem:[%s189 + $0x10] sm:$0xff] %v246
        %273 = vst [vmem:[%s189 + $0x18] sm:$0xff] %v253
        %274 = vst [vmem:[%s189 + $0x20] sm:$0xff] %v260
        %275 = vst [vmem:[%s189 + $0x28] sm:$0xff] %v267
        %s276 = sand.u32 %s99, 1
        %s277 = scalar_lea.sflag [#allocation6], %s276
        %s278 = sand.u32 %s99, 1
        %s279 = smul.addr %s278, 48
        %s280 = scalar_lea.vmem [#allocation7], %s279
        // Predicated region
        $region33: #{tpu_custom_call.1} parent=27 // pred_check
          %p281 = pneg %p109
        $region34: #{tpu_custom_call.1} parent=27 // pred_check_branch
          %283 = sbr.rel (%p281) target = $region36
        $region35: #{tpu_custom_call.1} parent=27 // pred_region
          %s284 = smul.u32 2, %s30
          %s286 = ssub.s32 768, 768
          %287 = vsyncadd %s277, %s286
          %s288 = smul.addr %s31, 12
          %s289 = sadd.s32 %s284, %s288
          %s290 = smul.addr %s289, 64
          %s291 = scalar_lea.hbm %s3, %s290
          %s292 = sshll.u32 %s280, 4
          %s293 = int_to_ptr.vmem [resolvable:$true] %s292
          %298 = dma.vmem_to_hbm [thread:$0]  %s293, 768, %s291, %s277, 128, 128, 8
        $region36: #{tpu_custom_call.1} parent=27 // pred_fallthru
          _
      $region28: #{tpu_custom_call.1} parent=5 // pred_fallthru
        _
      %p299 = scmp.le.s32.totalorder 2, %s21
      // Predicated region
      $region37: #{tpu_custom_call.1} parent=5 // pred_check
        %p300 = pneg %p299
      $region38: #{tpu_custom_call.1} parent=5 // pred_check_branch
        %302 = sbr.rel (%p300) target = $region40
      $region39: #{tpu_custom_call.1} parent=5 // pred_region
        %s303 = ssub.s32 %s21, 2
        // Predicated region
        $region41: #{tpu_custom_call.1} parent=39 // pred_check
          %p304 = pneg %p115
        $region42: #{tpu_custom_call.1} parent=39 // pred_check_branch
          %306 = sbr.rel (%p304) target = $region44
        $region43: #{tpu_custom_call.1} parent=39 // pred_region
          %s307 = sand.u32 %s100, 1
          %s308 = scalar_lea.sflag [#allocation6], %s307
          %s309 = sand.u32 %s100, 1
          %s310 = smul.addr %s309, 48
          %s311 = scalar_lea.vmem [#allocation7], %s310
          %312 = dma.done %s308, 768
        $region44: #{tpu_custom_call.1} parent=39 // pred_fallthru
          _
      $region40: #{tpu_custom_call.1} parent=5 // pred_fallthru
        _
    $region6: #{tpu_custom_call.1} parent=1 // loop_footer
      %s25 = sadd.s32 1, %s21
    $region7: #{tpu_custom_call.1} parent=1 // loop_footer_branch
      %20 = sbr.rel target = $region3
    $region8: #{tpu_custom_call.1} parent=1 // loop_exit
      _
    %313 = vsyncpa [#allocation5], 1
    %s314 = scalar_lea.sflag [#allocation5], 1
    %315 = vsyncpa %s314, 1
    %316 = vsyncpa [#allocation6], 1
    %s317 = scalar_lea.sflag [#allocation6], 1
    %318 = vsyncpa %s317, 1

</llo_original>
